<compile_context>
chip_gen: v7x
topology: tpu7x:2x2x1
jax: 0.10.0
libtpu: 0.0.40
codegen_flags: <defaults>
</compile_context>

<pallas_src>
import jax
import jax.numpy as jnp
from jax.experimental import pallas as pl
from jax.experimental.pallas import tpu as pltpu


def batchnorm1d_train_kernel(x_ref, params_ref, out_ref, new_rm_ref, new_rv_ref):
    """One feature (lane) tile.

    x_ref:      (N, TF)  input tile (full batch column).
    params_ref: (4, TF)  f32 rows = [weight, bias, running_mean, running_var].
    out_ref:    (N, TF)  normalized output tile (may be a partial edge tile).
    new_rm_ref: (1, TF)  updated running mean.
    new_rv_ref: (1, TF)  updated running var.
    """
    xf = x_ref[...].astype(jnp.float32)              # stats accumulated in f32
    n = xf.shape[0]

    p = params_ref[...]
    w, b = p[0:1, :], p[1:2, :]
    rm, rv = p[2:3, :], p[3:4, :]

    # Fused single sweep: sum and sum-of-squares.
    #   var = (sum(x^2) - n*mean^2) / (n - 1)   (torch.var's unbiased default)
    # Slightly worse cancellation than the two-pass form when |mean| >> std;
    # acceptable for this module.  N == 1 -> inf/nan at runtime, just like torch.var.
    s1 = jnp.sum(xf, axis=0, keepdims=True)          # [1, TF]
    s2 = jnp.sum(xf * xf, axis=0, keepdims=True)     # [1, TF]
    mean = s1 / n
    var = (s2 - s1 * mean) / (n - 1)

    # Running-stat updates (momentum 0.9 / 0.1), returned as extra outputs.
    new_rm_ref[...] = (0.9 * rm + 0.1 * mean).astype(new_rm_ref.dtype)
    new_rv_ref[...] = (0.9 * rv + 0.1 * var).astype(new_rv_ref.dtype)

    # Fold normalize + affine into one per-feature scale/shift FMA:
    #   y = (x - mean) * inv_std * w + b  ==  x * scale + shift
    inv_std = jax.lax.rsqrt(var + 1e-5)              # EUP, effectively free
    scale = w * inv_std
    shift = b - mean * scale
    out_ref[...] = (xf * scale + shift).astype(out_ref.dtype)


def _pick_feature_tile(F, N, itemsize):
    """Feature (lane) tile width.

    - F <= 128: one full-width tile (block dims equal the array dims, so no
      (8,128) alignment requirement and no padding at all).
    - otherwise: a multiple of 128 chosen so a single (N, TF) x tile is ~<= 4 MiB
      (so double-buffered in + out stays well inside scoped VMEM on every
      generation), capped so the grid has >= 2 tiles (v7x: 2 TensorCores).
    """
    if F <= 128:
        return F
    tile_budget = 4 << 20                                # bytes per (N, TF) x tile
    by_bytes = max(128, (tile_budget // max(1, N * itemsize)) // 128 * 128)
    f128 = pl.cdiv(F, 128) * 128
    half = max(128, (f128 // 2) // 128 * 128)             # force >= 2 grid tiles
    return int(min(by_bytes, half))


@jax.jit
def batchnorm1d_train(x, weight, bias, running_mean, running_var):
    """x: [N, F]; weight/bias/running_*: [F].
    Returns (y [N, F], new_running_mean [F], new_running_var [F])."""
    N, F = x.shape
    itemsize = x.dtype.itemsize

    TF = _pick_feature_tile(F, N, itemsize)
    num_tiles = pl.cdiv(F, TF)
    P = num_tiles * TF                                    # padded extent for params only

    # Stack the four tiny per-feature vectors into one (4, P) f32 slab:
    # one small param DMA per grid step instead of four.
    params = jnp.stack([weight.astype(jnp.float32),
                        bias.astype(jnp.float32),
                        running_mean.astype(jnp.float32),
                        running_var.astype(jnp.float32)], axis=0)
    if P != F:
        params = jnp.pad(params, ((0, 0), (0, P - F)))

    # NOTE: x is NOT padded and y is allocated at (N, F).  The last feature tile may
    # be partial; Pallas masks the OOB loads/stores, and pad-lane garbage stays in
    # pad lanes (batch reductions are per-lane).
    x_spec = pl.BlockSpec((N, TF), lambda j: (0, j))      # full batch column per tile
    p_spec = pl.BlockSpec((4, TF), lambda j: (0, j))
    y_spec = pl.BlockSpec((N, TF), lambda j: (0, j))
    s_spec = pl.BlockSpec((1, TF), lambda j: (0, j))

    # VMEM budget: double-buffered x tile in + y tile out + small params.
    # >= 32 MiB lifts v5e's 16 MiB default scoped VMEM; <= 48 MiB stays safely
    # inside v7x's 64 MiB physical VMEM.
    tile_bytes = N * TF * itemsize
    est = 4 * tile_bytes + 8 * 4 * P * 4 + (1 << 20)
    vmem_limit = int(min(48 << 20, max(32 << 20, est)))

    cost = pl.CostEstimate(
        flops=8 * N * F,
        transcendentals=F,
        bytes_accessed=2 * N * F * itemsize + 6 * F * 4,
    )

    y, new_rm, new_rv = pl.pallas_call(
        batchnorm1d_train_kernel,
        out_shape=(
            jax.ShapeDtypeStruct((N, F), x.dtype),
            jax.ShapeDtypeStruct((1, P), running_mean.dtype),
            jax.ShapeDtypeStruct((1, P), running_var.dtype),
        ),
        grid_spec=pltpu.PrefetchScalarGridSpec(
            num_scalar_prefetch=0,
            grid=(num_tiles,),
            in_specs=[x_spec, p_spec],
            out_specs=(y_spec, s_spec, s_spec),
        ),
        # Feature tiles are independent -> shard across TensorCores (v7x: 2 TCs).
        compiler_params=pltpu.CompilerParams(
            dimension_semantics=("parallel",),
            vmem_limit_bytes=vmem_limit),
        cost_estimate=cost,
    )(x, params)

    return y, new_rm[0, :F], new_rv[0, :F]


if __name__ == "__main__":
    def reference(x, w, b, rm, rv):
        mean = jnp.mean(x, axis=0)
        var = jnp.var(x, axis=0, ddof=1)          # torch.var default: unbiased
        y = (x - mean) / jnp.sqrt(var + 1e-5) * w + b
        return y, 0.9 * rm + 0.1 * mean, 0.9 * rv + 0.1 * var

    key = jax.random.PRNGKey(0)

    # (8, 32):  module-scale shapes (batch=8, hidden=32) -> single full-width tile.
    # (16, 200): exercises the multi-tile path with a partial remainder feature tile.
    for (N, F) in [(8, 32), (16, 200)]:
        kx, key = jax.random.split(key)
        x = jax.random.normal(kx, (N, F), dtype=jnp.float32)

        # Deterministic parameter init matching __init__: weight=1, bias=0,
        # running_mean=0, running_var=1.
        weight = jnp.ones((F,), dtype=jnp.float32)
        bias = jnp.zeros((F,), dtype=jnp.float32)
        running_mean = jnp.zeros((F,), dtype=jnp.float32)
        running_var = jnp.ones((F,), dtype=jnp.float32)

        y, new_rm, new_rv = batchnorm1d_train(x, weight, bias, running_mean, running_var)
        jax.block_until_ready((y, new_rm, new_rv))

        y_ref, rm_ref, rv_ref = reference(x, weight, bias, running_mean, running_var)
        assert jnp.allclose(y, y_ref, atol=1e-5, rtol=1e-4), ("y mismatch", N, F)
        assert jnp.allclose(new_rm, rm_ref, atol=1e-6), ("running_mean mismatch", N, F)
        assert jnp.allclose(new_rv, rv_ref, atol=1e-6), ("running_var mismatch", N, F)

    print("KERNEL_OK")
</pallas_src>

<mosaic_0001>
module attributes {stable_mosaic.version = 11 : i64} {
  func.func @batchnorm1d_train_kernel(%arg0: i32, %arg1: memref<8x32xf32, #tpu.memory_space<vmem>>, %arg2: memref<4x32xf32, #tpu.memory_space<vmem>>, %arg3: memref<8x32xf32, #tpu.memory_space<vmem>>, %arg4: memref<1x32xf32, #tpu.memory_space<vmem>>, %arg5: memref<1x32xf32, #tpu.memory_space<vmem>>) attributes {dimension_semantics = [#tpu.dimension_semantics<parallel>], iteration_bounds = array<i64: 1>, scalar_prefetch = 0 : i64, scratch_operands = 0 : i64, tpu.core_type = #tpu.core_type<tc>, window_params = [{transform_indices = @transform_0, window_bounds = array<i64: 8, 32>}, {transform_indices = @transform_1, window_bounds = array<i64: 4, 32>}, {transform_indices = @transform_2, window_bounds = array<i64: 8, 32>}, {transform_indices = @transform_3, window_bounds = array<i64: 1, 32>}, {transform_indices = @transform_4, window_bounds = array<i64: 1, 32>}]} {
    %c0 = arith.constant 0 : index
    %c0_0 = arith.constant 0 : index
    %0 = vector.load %arg1[%c0, %c0_0] : memref<8x32xf32, #tpu.memory_space<vmem>>, vector<8x32xf32>
    %c0_1 = arith.constant 0 : index
    %c0_2 = arith.constant 0 : index
    %1 = vector.load %arg2[%c0_1, %c0_2] : memref<4x32xf32, #tpu.memory_space<vmem>>, vector<4x32xf32>
    %2 = vector.extract_strided_slice %1 {offsets = [0, 0], sizes = [1, 32], strides = [1, 1]} : vector<4x32xf32> to vector<1x32xf32>
    %3 = vector.extract_strided_slice %1 {offsets = [1, 0], sizes = [1, 32], strides = [1, 1]} : vector<4x32xf32> to vector<1x32xf32>
    %4 = vector.extract_strided_slice %1 {offsets = [2, 0], sizes = [1, 32], strides = [1, 1]} : vector<4x32xf32> to vector<1x32xf32>
    %5 = vector.extract_strided_slice %1 {offsets = [3, 0], sizes = [1, 32], strides = [1, 1]} : vector<4x32xf32> to vector<1x32xf32>
    %cst = arith.constant dense<0.000000e+00> : vector<32xf32>
    %6 = vector.multi_reduction <add>, %0, %cst [0] : vector<8x32xf32> to vector<32xf32>
    %7 = vector.shape_cast %6 : vector<32xf32> to vector<1x32xf32>
    %8 = arith.mulf %0, %0 : vector<8x32xf32>
    %cst_3 = arith.constant dense<0.000000e+00> : vector<32xf32>
    %9 = vector.multi_reduction <add>, %8, %cst_3 [0] : vector<8x32xf32> to vector<32xf32>
    %10 = vector.shape_cast %9 : vector<32xf32> to vector<1x32xf32>
    %cst_4 = arith.constant 8.000000e+00 : f32
    %11 = vector.broadcast %cst_4 : f32 to vector<1x32xf32>
    %12 = arith.divf %7, %11 : vector<1x32xf32>
    %13 = arith.mulf %7, %12 : vector<1x32xf32>
    %14 = arith.subf %10, %13 : vector<1x32xf32>
    %cst_5 = arith.constant 7.000000e+00 : f32
    %15 = vector.broadcast %cst_5 : f32 to vector<1x32xf32>
    %16 = arith.divf %14, %15 : vector<1x32xf32>
    %cst_6 = arith.constant 0.899999976 : f32
    %17 = vector.broadcast %cst_6 : f32 to vector<1x32xf32>
    %18 = arith.mulf %17, %4 : vector<1x32xf32>
    %cst_7 = arith.constant 1.000000e-01 : f32
    %19 = vector.broadcast %cst_7 : f32 to vector<1x32xf32>
    %20 = arith.mulf %19, %12 : vector<1x32xf32>
    %21 = arith.addf %18, %20 : vector<1x32xf32>
    %c0_8 = arith.constant 0 : index
    %c0_9 = arith.constant 0 : index
    %22 = vector.load %arg4[%c0_8, %c0_9] : memref<1x32xf32, #tpu.memory_space<vmem>>, vector<1x32xf32>
    tpu.vector_store %arg4[%c0_8, %c0_9], %21 {strides = array<i32>} : memref<1x32xf32, #tpu.memory_space<vmem>>, vector<1x32xf32>,
    %cst_10 = arith.constant 0.899999976 : f32
    %23 = vector.broadcast %cst_10 : f32 to vector<1x32xf32>
    %24 = arith.mulf %23, %5 : vector<1x32xf32>
    %cst_11 = arith.constant 1.000000e-01 : f32
    %25 = vector.broadcast %cst_11 : f32 to vector<1x32xf32>
    %26 = arith.mulf %25, %16 : vector<1x32xf32>
    %27 = arith.addf %24, %26 : vector<1x32xf32>
    %c0_12 = arith.constant 0 : index
    %c0_13 = arith.constant 0 : index
    %28 = vector.load %arg5[%c0_12, %c0_13] : memref<1x32xf32, #tpu.memory_space<vmem>>, vector<1x32xf32>
    tpu.vector_store %arg5[%c0_12, %c0_13], %27 {strides = array<i32>} : memref<1x32xf32, #tpu.memory_space<vmem>>, vector<1x32xf32>,
    %cst_14 = arith.constant 9.99999974E-6 : f32
    %29 = vector.broadcast %cst_14 : f32 to vector<1x32xf32>
    %30 = arith.addf %16, %29 : vector<1x32xf32>
    %31 = math.rsqrt %30 : vector<1x32xf32>
    %32 = arith.mulf %2, %31 : vector<1x32xf32>
    %33 = arith.mulf %12, %32 : vector<1x32xf32>
    %34 = arith.subf %3, %33 : vector<1x32xf32>
    %35 = vector.broadcast %32 : vector<1x32xf32> to vector<8x32xf32>
    %36 = arith.mulf %0, %35 : vector<8x32xf32>
    %37 = vector.broadcast %34 : vector<1x32xf32> to vector<8x32xf32>
    %38 = arith.addf %36, %37 : vector<8x32xf32>
    %c0_15 = arith.constant 0 : index
    %c0_16 = arith.constant 0 : index
    %39 = vector.load %arg3[%c0_15, %c0_16] : memref<8x32xf32, #tpu.memory_space<vmem>>, vector<8x32xf32>
    tpu.vector_store %arg3[%c0_15, %c0_16], %38 {strides = array<i32>} : memref<8x32xf32, #tpu.memory_space<vmem>>, vector<8x32xf32>,
    return
  }
  func.func @transform_0(%arg0: i32) -> (i32, i32) {
    %c0_i32 = arith.constant 0 : i32
    %c0_i32_0 = arith.constant 0 : i32
    return %c0_i32, %arg0 : i32, i32
  }
  func.func @transform_1(%arg0: i32) -> (i32, i32) {
    %c0_i32 = arith.constant 0 : i32
    %c0_i32_0 = arith.constant 0 : i32
    return %c0_i32, %arg0 : i32, i32
  }
  func.func @transform_2(%arg0: i32) -> (i32, i32) {
    %c0_i32 = arith.constant 0 : i32
    %c0_i32_0 = arith.constant 0 : i32
    return %c0_i32, %arg0 : i32, i32
  }
  func.func @transform_3(%arg0: i32) -> (i32, i32) {
    %c0_i32 = arith.constant 0 : i32
    %c0_i32_0 = arith.constant 0 : i32
    return %c0_i32, %arg0 : i32, i32
  }
  func.func @transform_4(%arg0: i32) -> (i32, i32) {
    %c0_i32 = arith.constant 0 : i32
    %c0_i32_0 = arith.constant 0 : i32
    return %c0_i32, %arg0 : i32, i32
  }
}

</mosaic_0001>

<llo_original>
// kernel: batchnorm1d_train.1
$region0: #{batchnorm1d_train.1}
  #allocation0 [shape = 'u32[]', space=smem, size = 0x4, offset = 0x4, fixed_abs, tag = 'smem constant byte address 0x4 - core index']
  #allocation1 [shape = 'u32[144,128]{1,0:T(1,128)}', space=vmem, size = 0x12000, scoped, tag = 'internal scratch']
  %s0 = inlined_call_operand.vmem [shape: f32[8,32], index: 0, kind: input, shape index: {}]
  %s1 = inlined_call_operand.vmem [shape: f32[4,32], index: 1, kind: input, shape index: {}]
  %s2 = inlined_call_operand.hbm [shape: f32[8,32], index: 2, kind: output, shape index: {0}]
  %s3 = inlined_call_operand.hbm [shape: f32[1,32], index: 3, kind: output, shape index: {1}]
  %s4 = inlined_call_operand.hbm [shape: f32[1,32], index: 4, kind: output, shape index: {2}]
  %5 = xla_tuple %s2, %s3, %s4
  %s6 = sld [smem:[#allocation0]]
  $region34: #{batchnorm1d_train.1} parent=0
    _
  %s8 = ssub.s32 1, %s6
  %s9 = scalar_select 0, %s8, %s6
  $region1: #{batchnorm1d_train.1} parent=0
    #allocation2 [shape = 'u8[4096]{0}', space=vmem, size = 0x1000, scoped, tag = 'output window, operand 0, single buffered']
    #allocation3 [shape = 's32[1]{0}', space=sflag, size = 0x4, scoped, tag = 'scoped memory for batchnorm1d_train.1']
    #allocation4 [shape = 'u8[512]{0}', space=vmem, size = 0x400, scoped, tag = 'output window, operand 1, single buffered']
    #allocation5 [shape = 's32[1]{0}', space=sflag, size = 0x4, scoped, tag = 'scoped memory for batchnorm1d_train.1']
    #allocation6 [shape = 'u8[512]{0}', space=vmem, size = 0x400, scoped, tag = 'output window, operand 2, single buffered']
    %10 = vsyncpa [#allocation3], 0
    %11 = vsyncpa [#allocation5], 0
    // Predicated region
    $region2: #{batchnorm1d_train.1} parent=1 // pred_check
      _
    $region3: #{batchnorm1d_train.1} parent=1 // pred_check_branch
      %13 = sbr.rel (0) target = $region5
    $region4: #{batchnorm1d_train.1} parent=1 // pred_region
      _
    $region5: #{batchnorm1d_train.1} parent=1 // pred_fallthru
      _
    // Predicated region
    $region6: #{batchnorm1d_train.1} parent=1 // pred_check
      _
    $region7: #{batchnorm1d_train.1} parent=1 // pred_check_branch
      %15 = sbr.rel (0) target = $region9
    $region8: #{batchnorm1d_train.1} parent=1 // pred_region
      _
    $region9: #{batchnorm1d_train.1} parent=1 // pred_fallthru
      _
    %v16 = vld [vmem:[%s0] sm:$0xff]
    %v17 = vld [vmem:[%s1] sm:$0xf]
    %vm18 = vcmask 261120
    %v19 = vsel %vm18, %v16, 0.0
    %v20 = vrot.slane %v19, 4
    %v21 = vadd.f32 %v19, %v20
    %v22 = vrot.slane %v21, 2
    %v23 = vadd.f32 %v21, %v22
    %v24 = vrot.slane %v23, 1
    %v25 = vadd.f32 %v23, %v24
    %v26 = vmul.f32 %v16, %v16
    %v27 = vsel %vm18, %v26, 0.0
    %v28 = vrot.slane %v27, 4
    %v29 = vadd.f32 %v27, %v28
    %v30 = vrot.slane %v29, 2
    %v31 = vadd.f32 %v29, %v30
    %v32 = vrot.slane %v31, 1
    %v33 = vadd.f32 %v31, %v32
    %v34 = vrcp.pop 8.0
    %v35 = vmul.f32 %v25, %v34
    %v36 = vmul.f32 %v25, %v35
    %v37 = vsub.f32 %v33, %v36
    %v38 = vrcp.pop 7.0
    %v39 = vmul.f32 %v37, %v38
    %v40 = vmul.f32 %v17, 0.9
    %v41 = vmul.f32 %v35, 0.1
    %v42 = vadd.f32 %v40, %v41
    %vm43 = vcmask 256002
    %44 = vst.msk [vmem:[#allocation4 - $0x2] sm:$0x4] %vm43, %v42
    %v45 = vmul.f32 %v39, 0.1
    %v46 = vadd.f32 %v40, %v45
    %vm47 = vcmask 257027
    %48 = vst.msk [vmem:[#allocation6 - $0x3] sm:$0x8] %vm47, %v46
    %v49 = vadd.f32 %v39, 1e-05
    %v50 = vrsqrt.pop %v49
    %v51 = vmul.f32 %v17, %v50
    %v52 = vmul.f32 %v35, %v51
    %v54 = vrot.slane %v52, 7
    %v56 = vsub.f32 %v17, %v54
    %v57 = vlaneseq
    %v58 = vshrl.u32 %v57, 7
    %v59 = vsub.s32 0, %v58
    %v60 = vrot.slane %v51, %v59
    %v61 = vmul.f32 %v16, %v60
    %v62 = vlaneseq
    %v63 = vshrl.u32 %v62, 7
    %v64 = vsub.s32 1, %v63
    %v65 = vrot.slane %v56, %v64
    %v66 = vadd.f32 %v61, %v65
    %67 = vst.msk [vmem:[#allocation2] sm:$0xff] %vm18, %v66
    // Predicated region
    $region10: #{batchnorm1d_train.1} parent=1 // pred_check
      _
    $region11: #{batchnorm1d_train.1} parent=1 // pred_check_branch
      %69 = sbr.rel (0) target = $region13
    $region12: #{batchnorm1d_train.1} parent=1 // pred_region
      %s71 = ssub.s32 128, 128
      %72 = vsyncadd [#allocation3], %s71
      %s74 = sshll.u32 [#allocation2], 4
      %s75 = int_to_ptr.vmem [resolvable:$true] %s74
      %77 = dma.vmem_to_hbm [thread:$0]  %s75, 128, %s2, [#allocation3]
    $region13: #{batchnorm1d_train.1} parent=1 // pred_fallthru
      _
    // Predicated region
    $region14: #{batchnorm1d_train.1} parent=1 // pred_check
      _
    $region15: #{batchnorm1d_train.1} parent=1 // pred_check_branch
      %79 = sbr.rel (0) target = $region17
    $region16: #{batchnorm1d_train.1} parent=1 // pred_region
      %s81 = ssub.s32 16, 16
      %82 = vsyncadd [#allocation5], %s81
      %s84 = sshll.u32 [#allocation4], 4
      %s85 = int_to_ptr.vmem [resolvable:$true] %s84
      %87 = dma.vmem_to_hbm [thread:$0]  %s85, 16, %s3, [#allocation5]
    $region17: #{batchnorm1d_train.1} parent=1 // pred_fallthru
      _
    // Predicated region
    $region18: #{batchnorm1d_train.1} parent=1 // pred_check
      _
    $region19: #{batchnorm1d_train.1} parent=1 // pred_check_branch
      %89 = sbr.rel (0) target = $region21
    $region20: #{batchnorm1d_train.1} parent=1 // pred_region
      %s91 = ssub.s32 16, 16
      %92 = vsyncadd [#allocation5], %s91
      %s94 = sshll.u32 [#allocation6], 4
      %s95 = int_to_ptr.vmem [resolvable:$true] %s94
      %97 = dma.vmem_to_hbm [thread:$0]  %s95, 16, %s4, [#allocation5]
    $region21: #{batchnorm1d_train.1} parent=1 // pred_fallthru
      _
    // Predicated region
    $region22: #{batchnorm1d_train.1} parent=1 // pred_check
      _
    $region23: #{batchnorm1d_train.1} parent=1 // pred_check_branch
      %99 = sbr.rel (0) target = $region25
    $region24: #{batchnorm1d_train.1} parent=1 // pred_region
      %100 = dma.done [#allocation3], 128
    $region25: #{batchnorm1d_train.1} parent=1 // pred_fallthru
      _
    // Predicated region
    $region26: #{batchnorm1d_train.1} parent=1 // pred_check
      _
    $region27: #{batchnorm1d_train.1} parent=1 // pred_check_branch
      %102 = sbr.rel (0) target = $region29
    $region28: #{batchnorm1d_train.1} parent=1 // pred_region
      %103 = dma.done [#allocation5], 16
    $region29: #{batchnorm1d_train.1} parent=1 // pred_fallthru
      _
    // Predicated region
    $region30: #{batchnorm1d_train.1} parent=1 // pred_check
      _
    $region31: #{batchnorm1d_train.1} parent=1 // pred_check_branch
      %105 = sbr.rel (0) target = $region33
    $region32: #{batchnorm1d_train.1} parent=1 // pred_region
      %106 = dma.done [#allocation5], 16
    $region33: #{batchnorm1d_train.1} parent=1 // pred_fallthru
      _
    %107 = vsyncpa [#allocation3], 1
    %108 = vsyncpa [#allocation5], 1

</llo_original>
